<compile_context>
chip_gen: v7x
topology: tpu7x:2x2x1
jax: 0.10.0
libtpu: 0.0.40
codegen_flags: <defaults>
</compile_context>

<pallas_src>
import functools

import jax
import jax.numpy as jnp
from jax import lax
from jax.experimental import pallas as pl
from jax.experimental.pallas import tpu as pltpu


def _round_up(n, m):
    return ((n + m - 1) // m) * m


def _triplet_center_kernel(x_ref, centers_ref, t_blk_ref, t_all_ref, out_ref,
                           *, margin):
    x_in = x_ref[...]                         # (BM, D) native dtype
    c_in = centers_ref[...]                   # (C, D)  native dtype
    t_blk = t_blk_ref[...]                    # (BM, 1) int32 (-1 => padded row)
    t_all = t_all_ref[...]                    # (B_pad, 1) int32, full batch

    BM, D = x_in.shape
    C = c_in.shape[0]

    x = x_in.astype(jnp.float32)
    c = c_in.astype(jnp.float32)

    # ---- squared distances to the C distinct centers (Gram identity) -------
    # cross[i, c] = x_i . centers_c   (MXU, contract on D, native-dtype
    # operands, f32 accumulation)
    cross = lax.dot_general(x_in, c_in.astype(x_in.dtype),
                            (((1,), (1,)), ((), ())),
                            preferred_element_type=jnp.float32)        # (BM, C)
    x_sq = jnp.sum(x * x, axis=1, keepdims=True)                       # (BM, 1)
    # Row of center squared-norms, produced lane-dense as (1, C) directly via a
    # tiny ones-vector matmul (avoids a (C,1)->(1,C) cross-lane transpose).
    c_sq = lax.dot_general(jnp.ones((1, D), jnp.float32), c * c,
                           (((1,), (1,)), ((), ())),
                           preferred_element_type=jnp.float32)         # (1, C)
    d2 = x_sq + c_sq - 2.0 * cross                                     # (BM, C)

    # ---- masks --------------------------------------------------------------
    class_ids_blk = lax.broadcasted_iota(jnp.int32, (BM, C), 1)
    onehot = t_blk == class_ids_blk                                    # (BM, C)
    valid = (t_blk >= 0).astype(jnp.float32)                           # (BM, 1)

    # Class presence over the whole batch (padded rows have target -1).
    class_ids_all = lax.broadcasted_iota(jnp.int32, (t_all.shape[0], C), 1)
    present = jnp.sum((t_all == class_ids_all).astype(jnp.float32),
                      axis=0, keepdims=True) > 0.0                     # (1, C)

    neg_inf = jnp.float32(-jnp.inf)
    pos_inf = jnp.float32(jnp.inf)

    # dist_ap^2: all same-class columns in the original share one center, so
    # the max over them equals the distance to the sample's own center.
    d2_ap = jnp.max(jnp.where(onehot, d2, neg_inf), axis=1, keepdims=True)
    # dist_an^2: min over centers of classes present in the batch and != t_i.
    cand = jnp.logical_and(present, jnp.logical_not(onehot))           # (BM, C)
    d2_an = jnp.min(jnp.where(cand, d2, pos_inf), axis=1, keepdims=True)

    # sqrt / clamp deferred until after the reductions (monotone).  The clamp
    # also guards against slightly-negative d2 from cancellation.
    eps = jnp.float32(1e-12)
    dist_ap = jnp.sqrt(jnp.maximum(d2_ap, eps))                        # (BM, 1)
    dist_an = jnp.sqrt(jnp.maximum(d2_an, eps))                        # (BM, 1)

    # MarginRankingLoss(dist_an, dist_ap, y=1) -> relu(margin - (dist_an - dist_ap))
    per_row = jnp.maximum(jnp.float32(margin) - (dist_an - dist_ap), 0.0)
    loss_sum = jnp.sum(per_row * valid)
    cnt_sum = jnp.sum((dist_an > dist_ap).astype(jnp.float32) * valid)

    # Pack this block's partial sums into one lane-dense (8,128) slab:
    # sublane 0 -> sum of per-row losses, sublane 1 -> count(dist_an > dist_ap).
    row_idx = lax.broadcasted_iota(jnp.int32, (8, 128), 0)
    out_ref[...] = jnp.where(row_idx == 0, loss_sum,
                             jnp.where(row_idx == 1, cnt_sum, 0.0)
                             ).astype(jnp.float32)


def triplet_center_loss(inputs, targets, centers, margin=0.0, block_rows=128):
    """Returns (loss, prec) exactly as TripletCenterLoss.forward."""
    B, D = inputs.shape
    C, _ = centers.shape
    targets = targets.astype(jnp.int32)

    bm = min(int(block_rows), _round_up(B, 8))
    b_pad = _round_up(B, bm)
    grid = b_pad // bm

    pad = b_pad - B
    if pad:
        inputs = jnp.pad(inputs, ((0, pad), (0, 0)))
        targets = jnp.pad(targets, ((0, pad),), constant_values=-1)
    t_col = targets.reshape(b_pad, 1)

    out = pl.pallas_call(
        functools.partial(_triplet_center_kernel, margin=float(margin)),
        out_shape=jax.ShapeDtypeStruct((grid * 8, 128), jnp.float32),
        grid=(grid,),
        in_specs=[
            pl.BlockSpec((bm, D), lambda i: (i, 0)),       # x row block
            pl.BlockSpec((C, D), lambda i: (0, 0)),        # centers (resident)
            pl.BlockSpec((bm, 1), lambda i: (i, 0)),       # targets for this block
            pl.BlockSpec((b_pad, 1), lambda i: (0, 0)),    # full targets (class presence)
        ],
        out_specs=pl.BlockSpec((8, 128), lambda i: (i, 0)),
        compiler_params=pltpu.CompilerParams(
            dimension_semantics=("parallel",)),
    )(inputs, centers, t_col, t_col)

    partials = out.reshape(grid, 8, 128)
    loss = jnp.sum(partials[:, 0, 0]) / jnp.float32(B)
    prec = jnp.sum(partials[:, 1, 0]) / jnp.float32(B)
    return loss, prec


def _reference(inputs, targets, centers, margin=0.0):
    # Pure-JAX reference mirroring the PyTorch forward.
    B = inputs.shape[0]
    cb = centers[targets]                                    # (B, D)
    diff = cb[None, :, :] - inputs[:, None, :]               # (B, B, D)
    dist = jnp.sqrt(jnp.clip(jnp.sum(diff ** 2, axis=2), 1e-12))
    same = targets[None, :] == targets[:, None]
    dist_ap = jnp.max(jnp.where(same, dist, -jnp.inf), axis=1)
    dist_an = jnp.min(jnp.where(same, jnp.inf, dist), axis=1)
    loss = jnp.mean(jnp.maximum(margin - (dist_an - dist_ap), 0.0))
    prec = jnp.sum(dist_an > dist_ap) / B
    return loss, prec


if __name__ == "__main__":
    B, D, C = 8, 512, 2          # num_classes=2, centers are (2, 512) as in __init__
    key = jax.random.PRNGKey(0)
    k_in, k_cent = jax.random.split(key)
    inputs = jax.random.normal(k_in, (B, D), dtype=jnp.float32)
    # deterministic stand-in for nn.Parameter(torch.randn(num_classes, 512))
    centers = jax.random.normal(k_cent, (C, D), dtype=jnp.float32)
    targets = jnp.array([0, 1, 0, 1, 1, 0, 1, 0], dtype=jnp.int32)

    loss, prec = triplet_center_loss(inputs, targets, centers, margin=0.0)
    jax.block_until_ready((loss, prec))
    ref_loss, ref_prec = _reference(inputs, targets, centers, margin=0.0)
    assert jnp.allclose(loss, ref_loss, rtol=1e-4, atol=1e-4), (loss, ref_loss)
    assert jnp.allclose(prec, ref_prec, rtol=1e-4, atol=1e-4), (prec, ref_prec)

    # Second check with a nonzero margin to exercise the ranking-loss hinge.
    loss2, prec2 = triplet_center_loss(inputs, targets, centers, margin=0.5)
    jax.block_until_ready((loss2, prec2))
    ref_loss2, ref_prec2 = _reference(inputs, targets, centers, margin=0.5)
    assert jnp.allclose(loss2, ref_loss2, rtol=1e-4, atol=1e-4), (loss2, ref_loss2)
    assert jnp.allclose(prec2, ref_prec2, rtol=1e-4, atol=1e-4), (prec2, ref_prec2)

    print("KERNEL_OK")
</pallas_src>

<mosaic_0001>
module attributes {stable_mosaic.version = 11 : i64} {
  func.func @_triplet_center_kernel(%arg0: i32, %arg1: memref<8x512xf32, #tpu.memory_space<vmem>>, %arg2: memref<2x512xf32, #tpu.memory_space<vmem>>, %arg3: memref<8x1xi32, #tpu.memory_space<vmem>>, %arg4: memref<8x1xi32, #tpu.memory_space<vmem>>, %arg5: memref<8x128xf32, #tpu.memory_space<vmem>>) attributes {dimension_semantics = [#tpu.dimension_semantics<parallel>], iteration_bounds = array<i64: 1>, scalar_prefetch = 0 : i64, scratch_operands = 0 : i64, tpu.core_type = #tpu.core_type<tc>, window_params = [{transform_indices = @transform_0, window_bounds = array<i64: 8, 512>}, {pipeline_mode = #tpu.pipeline_mode<synchronous>, transform_indices = @transform_1, window_bounds = array<i64: 2, 512>}, {transform_indices = @transform_2, window_bounds = array<i64: 8, 1>}, {pipeline_mode = #tpu.pipeline_mode<synchronous>, transform_indices = @transform_3, window_bounds = array<i64: 8, 1>}, {transform_indices = @transform_4, window_bounds = array<i64: 8, 128>}]} {
    %c0 = arith.constant 0 : index
    %c0_0 = arith.constant 0 : index
    %0 = vector.load %arg1[%c0, %c0_0] : memref<8x512xf32, #tpu.memory_space<vmem>>, vector<8x512xf32>
    %c0_1 = arith.constant 0 : index
    %c0_2 = arith.constant 0 : index
    %1 = vector.load %arg2[%c0_1, %c0_2] : memref<2x512xf32, #tpu.memory_space<vmem>>, vector<2x512xf32>
    %c0_3 = arith.constant 0 : index
    %c0_4 = arith.constant 0 : index
    %2 = vector.load %arg3[%c0_3, %c0_4] : memref<8x1xi32, #tpu.memory_space<vmem>>, vector<8x1xi32>
    %c0_5 = arith.constant 0 : index
    %c0_6 = arith.constant 0 : index
    %3 = vector.load %arg4[%c0_5, %c0_6] : memref<8x1xi32, #tpu.memory_space<vmem>>, vector<8x1xi32>
    %cst = arith.constant dense<0.000000e+00> : vector<8x2xf32>
    %4 = tpu.matmul %0, %1, %cst {dimension_numbers = #tpu.dot_dimension_numbers<[1], [1], [0], [0], [0, 0, 1, 0], [], []>} : vector<8x512xf32>, vector<2x512xf32>, vector<8x2xf32> -> vector<8x2xf32>
    %5 = arith.mulf %0, %0 : vector<8x512xf32>
    %cst_7 = arith.constant dense<0.000000e+00> : vector<8xf32>
    %6 = vector.multi_reduction <add>, %5, %cst_7 [1] : vector<8x512xf32> to vector<8xf32>
    %7 = vector.shape_cast %6 : vector<8xf32> to vector<8x1xf32>
    %cst_8 = arith.constant 1.000000e+00 : f32
    %8 = vector.broadcast %cst_8 : f32 to vector<1x512xf32>
    %9 = arith.mulf %1, %1 : vector<2x512xf32>
    %cst_9 = arith.constant dense<0.000000e+00> : vector<1x2xf32>
    %10 = tpu.matmul %8, %9, %cst_9 {dimension_numbers = #tpu.dot_dimension_numbers<[1], [1], [0], [0], [0, 0, 1, 0], [], []>} : vector<1x512xf32>, vector<2x512xf32>, vector<1x2xf32> -> vector<1x2xf32>
    %11 = vector.broadcast %7 : vector<8x1xf32> to vector<8x2xf32>
    %12 = vector.broadcast %10 : vector<1x2xf32> to vector<8x2xf32>
    %13 = arith.addf %11, %12 : vector<8x2xf32>
    %cst_10 = arith.constant 2.000000e+00 : f32
    %14 = vector.broadcast %cst_10 : f32 to vector<8x2xf32>
    %15 = arith.mulf %14, %4 : vector<8x2xf32>
    %16 = arith.subf %13, %15 : vector<8x2xf32>
    %17 = tpu.iota {dimensions = array<i32: 1>} : vector<8x2xi32>
    %18 = vector.broadcast %2 : vector<8x1xi32> to vector<8x2xi32>
    %19 = arith.cmpi eq, %18, %17 : vector<8x2xi32>
    %c0_i32 = arith.constant 0 : i32
    %20 = vector.broadcast %c0_i32 : i32 to vector<8x1xi32>
    %21 = arith.cmpi sge, %2, %20 : vector<8x1xi32>
    %22 = arith.extui %21 : vector<8x1xi1> to vector<8x1xi32>
    %23 = arith.sitofp %22 : vector<8x1xi32> to vector<8x1xf32>
    %24 = tpu.iota {dimensions = array<i32: 1>} : vector<8x2xi32>
    %25 = vector.broadcast %3 : vector<8x1xi32> to vector<8x2xi32>
    %26 = arith.cmpi eq, %25, %24 : vector<8x2xi32>
    %27 = arith.extui %26 : vector<8x2xi1> to vector<8x2xi32>
    %28 = arith.sitofp %27 : vector<8x2xi32> to vector<8x2xf32>
    %cst_11 = arith.constant dense<0.000000e+00> : vector<2xf32>
    %29 = vector.multi_reduction <add>, %28, %cst_11 [0] : vector<8x2xf32> to vector<2xf32>
    %30 = vector.shape_cast %29 : vector<2xf32> to vector<1x2xf32>
    %cst_12 = arith.constant 0.000000e+00 : f32
    %31 = vector.broadcast %cst_12 : f32 to vector<1x2xf32>
    %32 = arith.cmpf ogt, %30, %31 : vector<1x2xf32>
    %cst_13 = arith.constant 0xFF800000 : f32
    %33 = vector.broadcast %cst_13 : f32 to vector<8x2xf32>
    %34 = arith.select %19, %16, %33 : vector<8x2xi1>, vector<8x2xf32>
    %cst_14 = arith.constant dense<0xFF800000> : vector<8xf32>
    %35 = vector.multi_reduction <maximumf>, %34, %cst_14 [1] : vector<8x2xf32> to vector<8xf32>
    %36 = vector.shape_cast %35 : vector<8xf32> to vector<8x1xf32>
    %cst_15 = arith.constant dense<true> : vector<8x2xi1>
    %37 = arith.xori %19, %cst_15 : vector<8x2xi1>
    %38 = vector.broadcast %32 : vector<1x2xi1> to vector<8x2xi1>
    %39 = arith.andi %38, %37 : vector<8x2xi1>
    %cst_16 = arith.constant 0x7F800000 : f32
    %40 = vector.broadcast %cst_16 : f32 to vector<8x2xf32>
    %41 = arith.select %39, %16, %40 : vector<8x2xi1>, vector<8x2xf32>
    %cst_17 = arith.constant dense<0x7F800000> : vector<8xf32>
    %42 = vector.multi_reduction <minimumf>, %41, %cst_17 [1] : vector<8x2xf32> to vector<8xf32>
    %43 = vector.shape_cast %42 : vector<8xf32> to vector<8x1xf32>
    %cst_18 = arith.constant 9.99999996E-13 : f32
    %44 = vector.broadcast %cst_18 : f32 to vector<8x1xf32>
    %45 = arith.maximumf %36, %44 : vector<8x1xf32>
    %46 = math.sqrt %45 : vector<8x1xf32>
    %cst_19 = arith.constant 9.99999996E-13 : f32
    %47 = vector.broadcast %cst_19 : f32 to vector<8x1xf32>
    %48 = arith.maximumf %43, %47 : vector<8x1xf32>
    %49 = math.sqrt %48 : vector<8x1xf32>
    %50 = arith.subf %49, %46 : vector<8x1xf32>
    %cst_20 = arith.constant 0.000000e+00 : f32
    %51 = vector.broadcast %cst_20 : f32 to vector<8x1xf32>
    %52 = arith.subf %51, %50 : vector<8x1xf32>
    %cst_21 = arith.constant 0.000000e+00 : f32
    %53 = vector.broadcast %cst_21 : f32 to vector<8x1xf32>
    %54 = arith.maximumf %52, %53 : vector<8x1xf32>
    %55 = arith.mulf %54, %23 : vector<8x1xf32>
    %56 = vector.shape_cast %55 : vector<8x1xf32> to vector<1x8x1xf32>
    %cst_22 = arith.constant dense<0.000000e+00> : vector<1xf32>
    %57 = vector.multi_reduction <add>, %56, %cst_22 [1, 2] : vector<1x8x1xf32> to vector<1xf32>
    %58 = vector.shape_cast %57 : vector<1xf32> to vector<1x1x1xf32>
    %59 = vector.extract %58[0, 0, 0] : f32 from vector<1x1x1xf32>
    %60 = arith.cmpf ogt, %49, %46 : vector<8x1xf32>
    %61 = arith.extui %60 : vector<8x1xi1> to vector<8x1xi32>
    %62 = arith.sitofp %61 : vector<8x1xi32> to vector<8x1xf32>
    %63 = arith.mulf %62, %23 : vector<8x1xf32>
    %64 = vector.shape_cast %63 : vector<8x1xf32> to vector<1x8x1xf32>
    %cst_23 = arith.constant dense<0.000000e+00> : vector<1xf32>
    %65 = vector.multi_reduction <add>, %64, %cst_23 [1, 2] : vector<1x8x1xf32> to vector<1xf32>
    %66 = vector.shape_cast %65 : vector<1xf32> to vector<1x1x1xf32>
    %67 = vector.extract %66[0, 0, 0] : f32 from vector<1x1x1xf32>
    %68 = tpu.iota {dimensions = array<i32: 0>} : vector<8x128xi32>
    %c0_i32_24 = arith.constant 0 : i32
    %69 = vector.broadcast %c0_i32_24 : i32 to vector<8x128xi32>
    %70 = arith.cmpi eq, %68, %69 : vector<8x128xi32>
    %c1_i32 = arith.constant 1 : i32
    %71 = vector.broadcast %c1_i32 : i32 to vector<8x128xi32>
    %72 = arith.cmpi eq, %68, %71 : vector<8x128xi32>
    %cst_25 = arith.constant 0.000000e+00 : f32
    %73 = vector.broadcast %67 : f32 to vector<8x128xf32>
    %74 = vector.broadcast %cst_25 : f32 to vector<8x128xf32>
    %75 = arith.select %72, %73, %74 : vector<8x128xi1>, vector<8x128xf32>
    %76 = vector.broadcast %59 : f32 to vector<8x128xf32>
    %77 = arith.select %70, %76, %75 : vector<8x128xi1>, vector<8x128xf32>
    %c0_26 = arith.constant 0 : index
    %c0_27 = arith.constant 0 : index
    %78 = vector.load %arg5[%c0_26, %c0_27] : memref<8x128xf32, #tpu.memory_space<vmem>>, vector<8x128xf32>
    tpu.vector_store %arg5[%c0_26, %c0_27], %77 {strides = array<i32>} : memref<8x128xf32, #tpu.memory_space<vmem>>, vector<8x128xf32>,
    return
  }
  func.func @transform_0(%arg0: i32) -> (i32, i32) {
    %c0_i32 = arith.constant 0 : i32
    %c0_i32_0 = arith.constant 0 : i32
    return %arg0, %c0_i32 : i32, i32
  }
  func.func @transform_1(%arg0: i32) -> (i32, i32) {
    %c0_i32 = arith.constant 0 : i32
    %c0_i32_0 = arith.constant 0 : i32
    %c0_i32_1 = arith.constant 0 : i32
    return %c0_i32, %c0_i32_0 : i32, i32
  }
  func.func @transform_2(%arg0: i32) -> (i32, i32) {
    %c0_i32 = arith.constant 0 : i32
    %c0_i32_0 = arith.constant 0 : i32
    return %arg0, %c0_i32 : i32, i32
  }
  func.func @transform_3(%arg0: i32) -> (i32, i32) {
    %c0_i32 = arith.constant 0 : i32
    %c0_i32_0 = arith.constant 0 : i32
    %c0_i32_1 = arith.constant 0 : i32
    return %c0_i32, %c0_i32_0 : i32, i32
  }
  func.func @transform_4(%arg0: i32) -> (i32, i32) {
    %c0_i32 = arith.constant 0 : i32
    %c0_i32_0 = arith.constant 0 : i32
    return %arg0, %c0_i32 : i32, i32
  }
}

</mosaic_0001>

<llo_original>
// kernel: tpu_custom_call.1
$region0: #{tpu_custom_call.1}
  #allocation0 [shape = 'u32[]', space=smem, size = 0x4, offset = 0x4, fixed_abs, tag = 'smem constant byte address 0x4 - core index']
  #allocation1 [shape = 'u32[144,128]{1,0:T(1,128)}', space=vmem, size = 0x12000, scoped, tag = 'internal scratch']
  %s0 = inlined_call_operand.hbm [shape: f32[8,512], index: 0, kind: input, shape index: {}]
  %s1 = inlined_call_operand.vmem [shape: f32[2,512], index: 1, kind: input, shape index: {}]
  %s2 = inlined_call_operand.vmem [shape: s32[8,1], index: 2, kind: input, shape index: {}]
  %s3 = inlined_call_operand.vmem [shape: s32[8,1], index: 3, kind: input, shape index: {}]
  %s4 = inlined_call_operand.hbm [shape: f32[8,128], index: 4, kind: output, shape index: {}]
  %s5 = sld [smem:[#allocation0]]
  $region30: #{tpu_custom_call.1} parent=0
    _
  %s7 = ssub.s32 1, %s5
  %s8 = scalar_select 0, %s7, %s5
  $region1: #{tpu_custom_call.1} parent=0
    #allocation2 [shape = 'u8[16384]{0}', space=vmem, size = 0x4000, scoped, tag = 'input window, operand 0, single buffered']
    #allocation3 [shape = 's32[1]{0}', space=sflag, size = 0x4, scoped, tag = 'scoped memory for tpu_custom_call.1']
    #allocation4 [shape = 's32[1]{0}', space=sflag, size = 0x4, scoped, tag = 'scoped memory for tpu_custom_call.1']
    #allocation5 [shape = 'u8[4096]{0}', space=vmem, size = 0x1000, scoped, tag = 'output window, operand 0, single buffered']
    %9 = vsyncpa [#allocation3], 0
    %10 = vsyncpa [#allocation4], 0
    // Predicated region
    $region2: #{tpu_custom_call.1} parent=1 // pred_check
      _
    $region3: #{tpu_custom_call.1} parent=1 // pred_check_branch
      %12 = sbr.rel (0) target = $region5
    $region4: #{tpu_custom_call.1} parent=1 // pred_region
      %s14 = ssub.s32 512, 512
      %15 = vsyncadd [#allocation3], %s14
      %s17 = sshll.u32 [#allocation2], 4
      %s18 = int_to_ptr.vmem [resolvable:$true] %s17
      %20 = dma.hbm_to_vmem [thread:$0]  %s0, 512, %s18, [#allocation3]
    $region5: #{tpu_custom_call.1} parent=1 // pred_fallthru
      _
    // Predicated region
    $region6: #{tpu_custom_call.1} parent=1 // pred_check
      _
    $region7: #{tpu_custom_call.1} parent=1 // pred_check_branch
      %22 = sbr.rel (0) target = $region9
    $region8: #{tpu_custom_call.1} parent=1 // pred_region
      _
    $region9: #{tpu_custom_call.1} parent=1 // pred_fallthru
      _
    // Predicated region
    $region10: #{tpu_custom_call.1} parent=1 // pred_check
      _
    $region11: #{tpu_custom_call.1} parent=1 // pred_check_branch
      %24 = sbr.rel (0) target = $region13
    $region12: #{tpu_custom_call.1} parent=1 // pred_region
      _
    $region13: #{tpu_custom_call.1} parent=1 // pred_fallthru
      _
    // Predicated region
    $region14: #{tpu_custom_call.1} parent=1 // pred_check
      _
    $region15: #{tpu_custom_call.1} parent=1 // pred_check_branch
      %26 = sbr.rel (0) target = $region17
    $region16: #{tpu_custom_call.1} parent=1 // pred_region
      _
    $region17: #{tpu_custom_call.1} parent=1 // pred_fallthru
      _
    // Predicated region
    $region18: #{tpu_custom_call.1} parent=1 // pred_check
      _
    $region19: #{tpu_custom_call.1} parent=1 // pred_check_branch
      %28 = sbr.rel (0) target = $region21
    $region20: #{tpu_custom_call.1} parent=1 // pred_region
      %29 = dma.done [#allocation3], 512
    $region21: #{tpu_custom_call.1} parent=1 // pred_fallthru
      _
    %v30 = vld [vmem:[#allocation2] sm:$0xff]
    %v31 = vld [vmem:[#allocation2 + $0x8] sm:$0xff]
    %v32 = vld [vmem:[#allocation2 + $0x10] sm:$0xff]
    %v33 = vld [vmem:[#allocation2 + $0x18] sm:$0xff]
    %v34 = vld [vmem:[%s1] sm:$0xff]
    %v35 = vld [vmem:[%s2] sm:$0xff]
    %v36 = vld [vmem:[%s3] sm:$0xff]
    %v38 = vcombine.high %v34, %v34
    %v40 = vunpack.c.l.s4 1983009808
    %v41 = vunpack.c.0.s8 %v40
    %v42 = vlaneseq
    %v43 = vshrl.u32 %v42, 7
    %v44 = vsub.s32 %v41, %v43
    %v45 = vrot.slane %v34, %v44
    %v47 = vunpack.c.l.s4 1983009808
    %v48 = vunpack.c.0.s8 %v47
    %v49 = vlaneseq
    %v50 = vshrl.u32 %v49, 7
    %v51 = vsub.s32 %v48, %v50
    %v52 = vrot.slane %v38, %v51
    %v53 = vcombine.high %v45, %v45
    %v54 = vcombine.high %v52, %v52
    %59 = vmatprep.subr.mxu0 %v53
    %60 = vmatpush1.xpose.msra.mxu0 %v45
    %61 = vmatprep.subr.mxu0 0.0
    %62 = vmatpush1.xpose.msra.mxu0 0.0
    %63 = vmatprep.subr.mxu0 0.0
    %64 = vmatpush1.xpose.msra.mxu0 0.0
    %65 = vmatprep.subr.mxu0 0.0
    %66 = vmatpush1.xpose.msra.mxu0 0.0
    %67 = vmatprep.subr.mxu0 0.0
    %68 = vmatpush1.xpose.msra.mxu0 0.0
    %69 = vmatprep.subr.mxu0 0.0
    %70 = vmatpush1.xpose.msra.mxu0 0.0
    %71 = vmatprep.subr.mxu0 0.0
    %72 = vmatpush1.xpose.msra.mxu0 0.0
    %73 = vmatprep.subr.mxu0 0.0
    %74 = vmatpush1.xpose.msra.mxu0 0.0
    %75 = vmatprep.subr.mxu0 0.0
    %76 = vmatpush1.xpose.msra.mxu0 0.0
    %77 = vmatprep.subr.mxu0 0.0
    %78 = vmatpush1.xpose.msra.mxu0 0.0
    %79 = vmatprep.subr.mxu0 0.0
    %80 = vmatpush1.xpose.msra.mxu0 0.0
    %81 = vmatprep.subr.mxu0 0.0
    %82 = vmatpush1.xpose.msra.mxu0 0.0
    %83 = vmatprep.subr.mxu0 0.0
    %84 = vmatpush1.xpose.msra.mxu0 0.0
    %85 = vmatprep.subr.mxu0 0.0
    %86 = vmatpush1.xpose.msra.mxu0 0.0
    %87 = vmatprep.subr.mxu0 0.0
    %88 = vmatpush1.xpose.msra.mxu0 0.0
    %89 = vmatprep.subr.mxu0 0.0
    %90 = vmatpush1.xpose.msra.mxu0 0.0
    %91 = vmatprep.subr.mxu0 0.0
    %92 = vmatpush1.xpose.msra.mxu0 0.0
    %93 = vmatprep.subr.mxu0 0.0
    %94 = vmatpush1.xpose.msra.mxu0 0.0
    %95 = vmatprep.subr.mxu0 0.0
    %96 = vmatpush1.xpose.msra.mxu0 0.0
    %97 = vmatprep.subr.mxu0 0.0
    %98 = vmatpush1.xpose.msra.mxu0 0.0
    %99 = vmatprep.subr.mxu0 0.0
    %100 = vmatpush1.xpose.msra.mxu0 0.0
    %101 = vmatprep.subr.mxu0 0.0
    %102 = vmatpush1.xpose.msra.mxu0 0.0
    %103 = vmatprep.subr.mxu0 0.0
    %104 = vmatpush1.xpose.msra.mxu0 0.0
    %105 = vmatprep.subr.mxu0 0.0
    %106 = vmatpush1.xpose.msra.mxu0 0.0
    %107 = vmatprep.subr.mxu0 0.0
    %108 = vmatpush1.xpose.msra.mxu0 0.0
    %109 = vmatprep.subr.mxu0 0.0
    %110 = vmatpush1.xpose.msra.mxu0 0.0
    %111 = vmatprep.subr.mxu0 0.0
    %112 = vmatpush1.xpose.msra.mxu0 0.0
    %113 = vmatprep.subr.mxu0 0.0
    %114 = vmatpush1.xpose.msra.mxu0 0.0
    %115 = vmatprep.subr.mxu0 0.0
    %116 = vmatpush1.xpose.msra.mxu0 0.0
    %117 = vmatprep.subr.mxu0 0.0
    %118 = vmatpush1.xpose.msra.mxu0 0.0
    %119 = vmatprep.subr.mxu0 0.0
    %120 = vmatpush1.xpose.msra.mxu0 0.0
    %121 = vmatprep.subr.mxu0 0.0
    %122 = vmatpush1.xpose.msra.mxu0 0.0
    %123 = vmatprep.mubr.f32.mxu0 %v31
    %124 = vmatmul.mubr.f32.gmra.mrb[0].mxu0 %v30
    %v125 = vpop.f32.mrb[0].mxu0
    %v126 = vadd.f32 0.0, %v125
    %v127 = vpop.f32.mrb[0].mxu0
    %128 = vdwg.mxu0
    %129 = vmatprep.subr.mxu0 %v54
    %130 = vmatpush1.xpose.msra.mxu0 %v52
    %131 = vmatprep.subr.mxu0 0.0
    %132 = vmatpush1.xpose.msra.mxu0 0.0
    %133 = vmatprep.subr.mxu0 0.0
    %134 = vmatpush1.xpose.msra.mxu0 0.0
    %135 = vmatprep.subr.mxu0 0.0
    %136 = vmatpush1.xpose.msra.mxu0 0.0
    %137 = vmatprep.subr.mxu0 0.0
    %138 = vmatpush1.xpose.msra.mxu0 0.0
    %139 = vmatprep.subr.mxu0 0.0
    %140 = vmatpush1.xpose.msra.mxu0 0.0
    %141 = vmatprep.subr.mxu0 0.0
    %142 = vmatpush1.xpose.msra.mxu0 0.0
    %143 = vmatprep.subr.mxu0 0.0
    %144 = vmatpush1.xpose.msra.mxu0 0.0
    %145 = vmatprep.subr.mxu0 0.0
    %146 = vmatpush1.xpose.msra.mxu0 0.0
    %147 = vmatprep.subr.mxu0 0.0
    %148 = vmatpush1.xpose.msra.mxu0 0.0
    %149 = vmatprep.subr.mxu0 0.0
    %150 = vmatpush1.xpose.msra.mxu0 0.0
    %151 = vmatprep.subr.mxu0 0.0
    %152 = vmatpush1.xpose.msra.mxu0 0.0
    %153 = vmatprep.subr.mxu0 0.0
    %154 = vmatpush1.xpose.msra.mxu0 0.0
    %155 = vmatprep.subr.mxu0 0.0
    %156 = vmatpush1.xpose.msra.mxu0 0.0
    %157 = vmatprep.subr.mxu0 0.0
    %158 = vmatpush1.xpose.msra.mxu0 0.0
    %159 = vmatprep.subr.mxu0 0.0
    %160 = vmatpush1.xpose.msra.mxu0 0.0
    %161 = vmatprep.subr.mxu0 0.0
    %162 = vmatpush1.xpose.msra.mxu0 0.0
    %163 = vmatprep.subr.mxu0 0.0
    %164 = vmatpush1.xpose.msra.mxu0 0.0
    %165 = vmatprep.subr.mxu0 0.0
    %166 = vmatpush1.xpose.msra.mxu0 0.0
    %167 = vmatprep.subr.mxu0 0.0
    %168 = vmatpush1.xpose.msra.mxu0 0.0
    %169 = vmatprep.subr.mxu0 0.0
    %170 = vmatpush1.xpose.msra.mxu0 0.0
    %171 = vmatprep.subr.mxu0 0.0
    %172 = vmatpush1.xpose.msra.mxu0 0.0
    %173 = vmatprep.subr.mxu0 0.0
    %174 = vmatpush1.xpose.msra.mxu0 0.0
    %175 = vmatprep.subr.mxu0 0.0
    %176 = vmatpush1.xpose.msra.mxu0 0.0
    %177 = vmatprep.subr.mxu0 0.0
    %178 = vmatpush1.xpose.msra.mxu0 0.0
    %179 = vmatprep.subr.mxu0 0.0
    %180 = vmatpush1.xpose.msra.mxu0 0.0
    %181 = vmatprep.subr.mxu0 0.0
    %182 = vmatpush1.xpose.msra.mxu0 0.0
    %183 = vmatprep.subr.mxu0 0.0
    %184 = vmatpush1.xpose.msra.mxu0 0.0
    %185 = vmatprep.subr.mxu0 0.0
    %186 = vmatpush1.xpose.msra.mxu0 0.0
    %187 = vmatprep.subr.mxu0 0.0
    %188 = vmatpush1.xpose.msra.mxu0 0.0
    %189 = vmatprep.subr.mxu0 0.0
    %190 = vmatpush1.xpose.msra.mxu0 0.0
    %191 = vmatprep.subr.mxu0 0.0
    %192 = vmatpush1.xpose.msra.mxu0 0.0
    %193 = vmatprep.mubr.f32.mxu0 %v33
    %194 = vmatmul.mubr.f32.gmra.mrb[0].mxu0 %v32
    %v195 = vpop.f32.mrb[0].mxu0
    %v196 = vadd.f32 %v126, %v195
    %v197 = vpop.f32.mrb[0].mxu0
    %198 = vdwg.mxu0
    %v199 = vmul.f32 %v30, %v30
    %v200 = vmul.f32 %v31, %v31
    %v201 = vmul.f32 %v32, %v32
    %v202 = vmul.f32 %v33, %v33
    %v203 = vadd.f32 %v199, %v200
    %v204 = vadd.f32 %v203, %v201
    %v205 = vadd.f32 %v204, %v202
    %206 = vadd.xlane.f32.xlu0 %v205
    %v207 = vpop.xlane.xlu0 %206
    %v208 = vmul.f32 %v34, %v34
    %v210 = vcombine.high %v208, %v208
    %v212 = vunpack.c.l.s4 1983009808
    %v213 = vunpack.c.0.s8 %v212
    %v214 = vlaneseq
    %v215 = vshrl.u32 %v214, 7
    %v216 = vsub.s32 %v213, %v215
    %v217 = vrot.slane %v208, %v216
    %v219 = vunpack.c.l.s4 1983009808
    %v220 = vunpack.c.0.s8 %v219
    %v221 = vlaneseq
    %v222 = vshrl.u32 %v221, 7
    %v223 = vsub.s32 %v220, %v222
    %v224 = vrot.slane %v210, %v223
    %v225 = vcombine.high %v217, %v217
    %v226 = vcombine.high %v224, %v224
    %231 = vmatprep.subr.mxu0 %v225
    %232 = vmatpush1.xpose.msra.mxu0 %v217
    %233 = vmatprep.subr.mxu0 0.0
    %234 = vmatpush1.xpose.msra.mxu0 0.0
    %235 = vmatprep.subr.mxu0 0.0
    %236 = vmatpush1.xpose.msra.mxu0 0.0
    %237 = vmatprep.subr.mxu0 0.0
    %238 = vmatpush1.xpose.msra.mxu0 0.0
    %239 = vmatprep.subr.mxu0 0.0
    %240 = vmatpush1.xpose.msra.mxu0 0.0
    %241 = vmatprep.subr.mxu0 0.0
    %242 = vmatpush1.xpose.msra.mxu0 0.0
    %243 = vmatprep.subr.mxu0 0.0
    %244 = vmatpush1.xpose.msra.mxu0 0.0
    %245 = vmatprep.subr.mxu0 0.0
    %246 = vmatpush1.xpose.msra.mxu0 0.0
    %247 = vmatprep.subr.mxu0 0.0
    %248 = vmatpush1.xpose.msra.mxu0 0.0
    %249 = vmatprep.subr.mxu0 0.0
    %250 = vmatpush1.xpose.msra.mxu0 0.0
    %251 = vmatprep.subr.mxu0 0.0
    %252 = vmatpush1.xpose.msra.mxu0 0.0
    %253 = vmatprep.subr.mxu0 0.0
    %254 = vmatpush1.xpose.msra.mxu0 0.0
    %255 = vmatprep.subr.mxu0 0.0
    %256 = vmatpush1.xpose.msra.mxu0 0.0
    %257 = vmatprep.subr.mxu0 0.0
    %258 = vmatpush1.xpose.msra.mxu0 0.0
    %259 = vmatprep.subr.mxu0 0.0
    %260 = vmatpush1.xpose.msra.mxu0 0.0
    %261 = vmatprep.subr.mxu0 0.0
    %262 = vmatpush1.xpose.msra.mxu0 0.0
    %263 = vmatprep.subr.mxu0 0.0
    %264 = vmatpush1.xpose.msra.mxu0 0.0
    %265 = vmatprep.subr.mxu0 0.0
    %266 = vmatpush1.xpose.msra.mxu0 0.0
    %267 = vmatprep.subr.mxu0 0.0
    %268 = vmatpush1.xpose.msra.mxu0 0.0
    %269 = vmatprep.subr.mxu0 0.0
    %270 = vmatpush1.xpose.msra.mxu0 0.0
    %271 = vmatprep.subr.mxu0 0.0
    %272 = vmatpush1.xpose.msra.mxu0 0.0
    %273 = vmatprep.subr.mxu0 0.0
    %274 = vmatpush1.xpose.msra.mxu0 0.0
    %275 = vmatprep.subr.mxu0 0.0
    %276 = vmatpush1.xpose.msra.mxu0 0.0
    %277 = vmatprep.subr.mxu0 0.0
    %278 = vmatpush1.xpose.msra.mxu0 0.0
    %279 = vmatprep.subr.mxu0 0.0
    %280 = vmatpush1.xpose.msra.mxu0 0.0
    %281 = vmatprep.subr.mxu0 0.0
    %282 = vmatpush1.xpose.msra.mxu0 0.0
    %283 = vmatprep.subr.mxu0 0.0
    %284 = vmatpush1.xpose.msra.mxu0 0.0
    %285 = vmatprep.subr.mxu0 0.0
    %286 = vmatpush1.xpose.msra.mxu0 0.0
    %287 = vmatprep.subr.mxu0 0.0
    %288 = vmatpush1.xpose.msra.mxu0 0.0
    %289 = vmatprep.subr.mxu0 0.0
    %290 = vmatpush1.xpose.msra.mxu0 0.0
    %291 = vmatprep.subr.mxu0 0.0
    %292 = vmatpush1.xpose.msra.mxu0 0.0
    %293 = vmatprep.subr.mxu0 0.0
    %294 = vmatpush1.xpose.msra.mxu0 0.0
    %295 = vmatprep.mubr.f32.mxu0 1.0
    %296 = vmatmul.mubr.f32.gmra.mrb[0].mxu0 1.0
    %v297 = vpop.f32.mrb[0].mxu0
    %v298 = vadd.f32 0.0, %v297
    %v299 = vpop.f32.mrb[0].mxu0
    %300 = vdwg.mxu0
    %301 = vmatprep.subr.mxu0 %v226
    %302 = vmatpush1.xpose.msra.mxu0 %v224
    %303 = vmatprep.subr.mxu0 0.0
    %304 = vmatpush1.xpose.msra.mxu0 0.0
    %305 = vmatprep.subr.mxu0 0.0
    %306 = vmatpush1.xpose.msra.mxu0 0.0
    %307 = vmatprep.subr.mxu0 0.0
    %308 = vmatpush1.xpose.msra.mxu0 0.0
    %309 = vmatprep.subr.mxu0 0.0
    %310 = vmatpush1.xpose.msra.mxu0 0.0
    %311 = vmatprep.subr.mxu0 0.0
    %312 = vmatpush1.xpose.msra.mxu0 0.0
    %313 = vmatprep.subr.mxu0 0.0
    %314 = vmatpush1.xpose.msra.mxu0 0.0
    %315 = vmatprep.subr.mxu0 0.0
    %316 = vmatpush1.xpose.msra.mxu0 0.0
    %317 = vmatprep.subr.mxu0 0.0
    %318 = vmatpush1.xpose.msra.mxu0 0.0
    %319 = vmatprep.subr.mxu0 0.0
    %320 = vmatpush1.xpose.msra.mxu0 0.0
    %321 = vmatprep.subr.mxu0 0.0
    %322 = vmatpush1.xpose.msra.mxu0 0.0
    %323 = vmatprep.subr.mxu0 0.0
    %324 = vmatpush1.xpose.msra.mxu0 0.0
    %325 = vmatprep.subr.mxu0 0.0
    %326 = vmatpush1.xpose.msra.mxu0 0.0
    %327 = vmatprep.subr.mxu0 0.0
    %328 = vmatpush1.xpose.msra.mxu0 0.0
    %329 = vmatprep.subr.mxu0 0.0
    %330 = vmatpush1.xpose.msra.mxu0 0.0
    %331 = vmatprep.subr.mxu0 0.0
    %332 = vmatpush1.xpose.msra.mxu0 0.0
    %333 = vmatprep.subr.mxu0 0.0
    %334 = vmatpush1.xpose.msra.mxu0 0.0
    %335 = vmatprep.subr.mxu0 0.0
    %336 = vmatpush1.xpose.msra.mxu0 0.0
    %337 = vmatprep.subr.mxu0 0.0
    %338 = vmatpush1.xpose.msra.mxu0 0.0
    %339 = vmatprep.subr.mxu0 0.0
    %340 = vmatpush1.xpose.msra.mxu0 0.0
    %341 = vmatprep.subr.mxu0 0.0
    %342 = vmatpush1.xpose.msra.mxu0 0.0
    %343 = vmatprep.subr.mxu0 0.0
    %344 = vmatpush1.xpose.msra.mxu0 0.0
    %345 = vmatprep.subr.mxu0 0.0
    %346 = vmatpush1.xpose.msra.mxu0 0.0
    %347 = vmatprep.subr.mxu0 0.0
    %348 = vmatpush1.xpose.msra.mxu0 0.0
    %349 = vmatprep.subr.mxu0 0.0
    %350 = vmatpush1.xpose.msra.mxu0 0.0
    %351 = vmatprep.subr.mxu0 0.0
    %352 = vmatpush1.xpose.msra.mxu0 0.0
    %353 = vmatprep.subr.mxu0 0.0
    %354 = vmatpush1.xpose.msra.mxu0 0.0
    %355 = vmatprep.subr.mxu0 0.0
    %356 = vmatpush1.xpose.msra.mxu0 0.0
    %357 = vmatprep.subr.mxu0 0.0
    %358 = vmatpush1.xpose.msra.mxu0 0.0
    %359 = vmatprep.subr.mxu0 0.0
    %360 = vmatpush1.xpose.msra.mxu0 0.0
    %361 = vmatprep.subr.mxu0 0.0
    %362 = vmatpush1.xpose.msra.mxu0 0.0
    %363 = vmatprep.subr.mxu0 0.0
    %364 = vmatpush1.xpose.msra.mxu0 0.0
    %365 = vmatprep.mubr.f32.mxu0 1.0
    %366 = vmatmul.mubr.f32.gmra.mrb[0].mxu0 1.0
    %v367 = vpop.f32.mrb[0].mxu0
    %v368 = vadd.f32 %v298, %v367
    %v369 = vpop.f32.mrb[0].mxu0
    %370 = vdwg.mxu0
    %v371 = vlaneseq
    %v372 = vshrl.u32 %v371, 7
    %v373 = vsub.s32 0, %v372
    %v374 = vrot.slane %v368, %v373
    %v375 = vadd.f32 %v207, %v374
    %v376 = vmul.f32 %v196, 2.0
    %v377 = vsub.f32 %v375, %v376
    %v378 = vlaneseq
    %v379 = vand.u32 %v378, 127
    %380 = vset.pattern.permute.xlu0 0
    %381 = vperm.xlu0 %380, %v35
    %v382 = vpop.permute.xlu0 %381
    %vm383 = vcmp.eq.s32.totalorder %v382, %v379
    %vm384 = vcmp.ge.s32.totalorder %v35, 0
    %v385 = vsel %vm384, 1, 0
    %v386 = vcvt.s32.f32 %v385
    %387 = vset.pattern.permute.xlu0 0
    %388 = vperm.xlu0 %387, %v36
    %v389 = vpop.permute.xlu0 %388
    %vm390 = vcmp.eq.s32.totalorder %v389, %v379
    %v391 = vsel %vm390, 1, 0
    %v392 = vcvt.s32.f32 %v391
    %vm393 = vcmask 15360
    %v394 = vsel %vm393, %v392, 0.0
    %v395 = vrot.slane %v394, 4
    %v396 = vadd.f32 %v394, %v395
    %v397 = vrot.slane %v396, 2
    %v398 = vadd.f32 %v396, %v397
    %v399 = vrot.slane %v398, 1
    %v400 = vadd.f32 %v398, %v399
    %vm401 = vcmp.gt.f32.partialorder %v400, 0.0
    %v402 = vsel %vm383, %v377, -inf
    %v403 = vsel %vm393, %v402, -inf
    %404 = vmax.xlane.f32.xlu0 %v403
    %v405 = vpop.xlane.xlu0 %404
    %vm406 = vmxor %vm383, 1
    %v407 = vsel %vm401, 1, 0
    %vm408 = vcmp.eq.s32.totalorder %v407, 1
    %vm409 = vmand %vm408, %vm406
    %v410 = vsel %vm409, %v377, inf
    %v411 = vsel %vm393, %v410, inf
    %412 = vmin.xlane.f32.xlu0 %v411
    %v413 = vpop.xlane.xlu0 %412
    %v414 = vmax.f32 %v405, 1e-12
    %v415 = vrsqrt.pop %v414
    %v416 = vmul.f32 %v414, %v415
    %vm417 = vcmp.eq.f32.partialorder %v414, inf
    %v418 = vsel %vm417, %v414, %v416
    %vm419 = vcmp.eq.f32.partialorder %v414, 0.0
    %v420 = vand.u32 %v414, 2147483648
    %v421 = vsel %vm419, %v420, %v418
    %v422 = vmax.f32 %v413, 1e-12
    %v423 = vrsqrt.pop %v422
    %v424 = vmul.f32 %v422, %v423
    %vm425 = vcmp.eq.f32.partialorder %v422, inf
    %v426 = vsel %vm425, %v422, %v424
    %vm427 = vcmp.eq.f32.partialorder %v422, 0.0
    %v428 = vand.u32 %v422, 2147483648
    %v429 = vsel %vm427, %v428, %v426
    %v430 = vsub.f32 %v429, %v421
    %v431 = vsub.f32 0.0, %v430
    %v432 = vmax.f32 %v431, 0.0
    %v433 = vmul.f32 %v432, %v386
    %vm434 = vcmask 7168
    %v435 = vsel %vm434, %v433, 0.0
    %436 = vadd.xlane.f32.xlu0 %v435
    %v437 = vpop.xlane.xlu0 %436
    %v438 = vrot.slane %v437, 4
    %v439 = vadd.f32 %v437, %v438
    %v440 = vrot.slane %v439, 2
    %v441 = vadd.f32 %v439, %v440
    %v442 = vrot.slane %v441, 1
    %v443 = vadd.f32 %v441, %v442
    %s444 = vtos %v443
    %vm445 = vcmp.gt.f32.partialorder %v429, %v421
    %v446 = vsel %vm445, 1, 0
    %v447 = vcvt.s32.f32 %v446
    %v448 = vmul.f32 %v447, %v386
    %v449 = vsel %vm434, %v448, 0.0
    %450 = vadd.xlane.f32.xlu0 %v449
    %v451 = vpop.xlane.xlu0 %450
    %v452 = vrot.slane %v451, 4
    %v453 = vadd.f32 %v451, %v452
    %v454 = vrot.slane %v453, 2
    %v455 = vadd.f32 %v453, %v454
    %v456 = vrot.slane %v455, 1
    %v457 = vadd.f32 %v455, %v456
    %s458 = vtos %v457
    %v459 = vlaneseq
    %v460 = vshrl.u32 %v459, 7
    %vm461 = vcmp.eq.s32.totalorder %v460, 0
    %vm462 = vcmp.eq.s32.totalorder %v460, 1
    %v463 = vstv %s458
    %v464 = vsel %vm462, %v463, 0.0
    %v465 = vstv %s444
    %v466 = vsel %vm461, %v465, %v464
    %467 = vst [vmem:[#allocation5] sm:$0xff] %v466
    // Predicated region
    $region22: #{tpu_custom_call.1} parent=1 // pred_check
      _
    $region23: #{tpu_custom_call.1} parent=1 // pred_check_branch
      %469 = sbr.rel (0) target = $region25
    $region24: #{tpu_custom_call.1} parent=1 // pred_region
      %s471 = ssub.s32 128, 128
      %472 = vsyncadd [#allocation4], %s471
      %s474 = sshll.u32 [#allocation5], 4
      %s475 = int_to_ptr.vmem [resolvable:$true] %s474
      %477 = dma.vmem_to_hbm [thread:$0]  %s475, 128, %s4, [#allocation4]
    $region25: #{tpu_custom_call.1} parent=1 // pred_fallthru
      _
    // Predicated region
    $region26: #{tpu_custom_call.1} parent=1 // pred_check
      _
    $region27: #{tpu_custom_call.1} parent=1 // pred_check_branch
      %479 = sbr.rel (0) target = $region29
    $region28: #{tpu_custom_call.1} parent=1 // pred_region
      %480 = dma.done [#allocation4], 128
    $region29: #{tpu_custom_call.1} parent=1 // pred_fallthru
      _
    %481 = vsyncpa [#allocation3], 1
    %482 = vsyncpa [#allocation4], 1

</llo_original>
